<compile_context>
chip_gen: v5e
topology: v5e:2x2
jax: 0.10.0
libtpu: 0.0.40
codegen_flags: <defaults>
</compile_context>

<pallas_src>
import functools

import jax
import jax.numpy as jnp
from jax.experimental import pallas as pl
from jax.experimental.pallas import tpu as pltpu

_EPS = 1e-5


def _block_kernel(*refs, stride, fuse_sc, identity_sc, H, W, Ho, Wo,
                  matmul_dtype):
    """One image per grid step; activations are channel-major (C, H*W)."""
    it = iter(refs)
    x_ref = next(it)
    w1_ref = next(it)
    b1_ref = next(it)
    dw_ref = next(it)
    b2_ref = next(it)
    w3_ref = next(it)
    b3_ref = next(it)
    m_ref = next(it)
    wsc_ref = next(it) if fuse_sc else None
    colsel_ref = next(it) if stride > 1 else None
    out_ref = next(it)

    hw = H * W
    md = matmul_dtype

    # ---- stage 1: 1x1 expand conv (BN folded) + bias + ReLU -----------------
    t = jnp.dot(w1_ref[...], x_ref[...].astype(md),
                preferred_element_type=jnp.float32)
    t = jnp.maximum(t + b1_ref[...], 0.0)            # (planes, hw) f32

    # ---- stage 2: 3x3 depthwise conv (pad=1) as 9 rolled + masked FMAs ------
    dw = dw_ref[...]                                  # (planes, 9) f32
    masks = m_ref[...]                                # (8, hw) f32 0/1
    acc = t * dw[:, 4:5]                              # center tap
    tap = 0
    for dy in (-1, 0, 1):
        for dx in (-1, 0, 1):
            if dy == 0 and dx == 0:
                continue
            s = dy * W + dx                           # flat neighbor offset
            k = (dy + 1) * 3 + (dx + 1)
            shifted = pltpu.roll(t, shift=(-s) % hw, axis=1)   # shifted[p]=t[p+s]
            acc = acc + (shifted * masks[tap:tap + 1, :]) * dw[:, k:k + 1]
            tap += 1

    if stride > 1:
        # Decimate: contiguous row slices + tiny per-row (W, Wo) 0/1 matmul
        # (kept in f32 so decimation is exact).
        colsel = colsel_ref[...]
        rows = []
        for ho in range(Ho):
            base = ho * stride * W
            rows.append(jnp.dot(acc[:, base:base + W], colsel,
                                preferred_element_type=jnp.float32))
        acc = jnp.concatenate(rows, axis=1)           # (planes, Ho*Wo)

    t2 = jnp.maximum(acc + b2_ref[...], 0.0)          # (planes, Ho*Wo)

    # ---- stage 3: 1x1 project conv (+BN folded) + shortcut ------------------
    o = jnp.dot(w3_ref[...], t2.astype(md),
                preferred_element_type=jnp.float32) + b3_ref[...]
    if fuse_sc:
        # Shortcut 1x1 conv as a second accumulated matmul, f32 operands.
        o = o + jnp.dot(wsc_ref[...], x_ref[...],
                        preferred_element_type=jnp.float32)
    elif identity_sc:
        o = o + x_ref[...]
    out_ref[...] = o.astype(out_ref.dtype)


def _make_tap_masks(H, W):
    """(8, H*W) 0/1 masks marking where each non-center 3x3 tap is in-bounds."""
    idx = jnp.arange(H * W)
    hh = idx // W
    ww = idx % W
    rows = []
    for dy in (-1, 0, 1):
        for dx in (-1, 0, 1):
            if dy == 0 and dx == 0:
                continue
            m = jnp.ones((H * W,), jnp.bool_)
            if dy == -1:
                m = m & (hh >= 1)
            elif dy == 1:
                m = m & (hh <= H - 2)
            if dx == -1:
                m = m & (ww >= 1)
            elif dx == 1:
                m = m & (ww <= W - 2)
            rows.append(m)
    return jnp.stack(rows).astype(jnp.float32)


def _vmem_limit_bytes():
    try:
        kind = jax.devices()[0].device_kind.lower()
    except Exception:
        return 32 * 1024 * 1024
    if "v7" in kind:                   # 64 MiB physical VMEM: stay well under.
        return 48 * 1024 * 1024
    if "v6" in kind or "v5" in kind:   # 128 MiB physical VMEM: allow big tiles.
        return 96 * 1024 * 1024
    return 32 * 1024 * 1024


def fold_block_params(p, *, stride):
    """Fold inference BatchNorm into conv weights; return kernel-layout params."""
    def fold(gamma, beta, mean, var):
        s = gamma / jnp.sqrt(var + _EPS)
        return s, beta - mean * s

    s1, b1 = fold(*p['bn1'])
    s2, b2 = fold(*p['bn2'])
    s3, b3 = fold(*p['bn3'])

    planes = p['w1'].shape[0]
    in_planes = p['w1'].shape[1]
    out_planes = p['w3'].shape[0]

    w1 = p['w1'][:, :, 0, 0] * s1[:, None]                 # (planes, Cin)
    dw = p['dw'][:, 0].reshape(planes, 9) * s2[:, None]    # (planes, 9)
    w3 = p['w3'][:, :, 0, 0] * s3[:, None]                 # (Cout, planes)

    fuse_sc = (stride == 1 and in_planes != out_planes)
    identity_sc = (stride == 1 and in_planes == out_planes)

    wsc = None
    if fuse_sc:
        ssc, bsc = fold(*p['bnsc'])
        wsc = (p['wsc'][:, :, 0, 0] * ssc[:, None]).astype(jnp.float32)
        b3 = b3 + bsc

    return dict(
        w1=w1.astype(jnp.float32),
        b1=b1.reshape(-1, 1).astype(jnp.float32),
        dw=dw.astype(jnp.float32),
        b2=b2.reshape(-1, 1).astype(jnp.float32),
        w3=w3.astype(jnp.float32),
        b3=b3.reshape(-1, 1).astype(jnp.float32),
        wsc=wsc, fuse_sc=fuse_sc, identity_sc=identity_sc,
    )


def block_forward_pallas(x_nchw, fp, *, stride, matmul_dtype=jnp.bfloat16):
    """x_nchw: (N, Cin, H, W) float32 -> (N, Cout, Ho, Wo) float32."""
    N, Cin, H, W = x_nchw.shape
    Cout = fp['w3'].shape[0]
    Ho = (H - 1) // stride + 1
    Wo = (W - 1) // stride + 1
    HW, HoWo = H * W, Ho * Wo

    # No transposes: per-image (Cin, H*W) slabs are contiguous in NCHW.
    x3 = x_nchw.reshape(N, Cin, HW).astype(jnp.float32)
    masks = _make_tap_masks(H, W)

    inputs = [x3,
              fp['w1'].astype(matmul_dtype), fp['b1'],
              fp['dw'], fp['b2'],
              fp['w3'].astype(matmul_dtype), fp['b3'],
              masks]

    def full_spec(a):
        nd = a.ndim
        return pl.BlockSpec(a.shape, lambda i, _nd=nd: (0,) * _nd)

    in_specs = [pl.BlockSpec((None, Cin, HW), lambda i: (i, 0, 0))]
    in_specs += [full_spec(a) for a in inputs[1:]]

    if fp['fuse_sc']:
        inputs.append(fp['wsc'])                         # f32 shortcut conv
        in_specs.append(full_spec(inputs[-1]))
    if stride > 1:
        colsel = jnp.zeros((W, Wo), jnp.float32)
        colsel = colsel.at[jnp.arange(Wo) * stride, jnp.arange(Wo)].set(1.0)
        inputs.append(colsel)
        in_specs.append(full_spec(colsel))

    kernel = functools.partial(
        _block_kernel, stride=stride, fuse_sc=fp['fuse_sc'],
        identity_sc=fp['identity_sc'], H=H, W=W, Ho=Ho, Wo=Wo,
        matmul_dtype=matmul_dtype)

    out3 = pl.pallas_call(
        kernel,
        out_shape=jax.ShapeDtypeStruct((N, Cout, HoWo), jnp.float32),
        grid=(N,),
        in_specs=in_specs,
        out_specs=pl.BlockSpec((None, Cout, HoWo), lambda i: (i, 0, 0)),
        compiler_params=pltpu.CompilerParams(
            dimension_semantics=("parallel",),
            vmem_limit_bytes=_vmem_limit_bytes()),
    )(*inputs)

    return out3.reshape(N, Cout, Ho, Wo)


def _reference_nchw(x, p, *, stride):
    """Pure-JAX (XLA conv) reference of the PyTorch forward in eval mode."""
    dn = ('NCHW', 'OIHW', 'NCHW')
    planes = p['w1'].shape[0]
    in_planes = p['w1'].shape[1]
    out_planes = p['w3'].shape[0]

    def bn(y, g, b, m, v):
        sh = (1, -1, 1, 1)
        return ((y - m.reshape(sh)) / jnp.sqrt(v.reshape(sh) + _EPS)
                * g.reshape(sh) + b.reshape(sh))

    y = jax.lax.conv_general_dilated(x, p['w1'], (1, 1), 'VALID',
                                     dimension_numbers=dn)
    y = jax.nn.relu(bn(y, *p['bn1']))
    y = jax.lax.conv_general_dilated(y, p['dw'], (stride, stride),
                                     ((1, 1), (1, 1)), dimension_numbers=dn,
                                     feature_group_count=planes)
    y = jax.nn.relu(bn(y, *p['bn2']))
    y = jax.lax.conv_general_dilated(y, p['w3'], (1, 1), 'VALID',
                                     dimension_numbers=dn)
    y = bn(y, *p['bn3'])
    if stride == 1:
        if in_planes != out_planes:
            sc = jax.lax.conv_general_dilated(x, p['wsc'], (1, 1), 'VALID',
                                              dimension_numbers=dn)
            sc = bn(sc, *p['bnsc'])
        else:
            sc = x
        y = y + sc
    return y


def _bn_params(k, c):
    k1, k2, k3, k4 = jax.random.split(k, 4)
    gamma = 1.0 + 0.1 * jax.random.normal(k1, (c,), jnp.float32)
    beta = 0.1 * jax.random.normal(k2, (c,), jnp.float32)
    mean = 0.1 * jax.random.normal(k3, (c,), jnp.float32)
    var = 0.5 + jax.random.uniform(k4, (c,), jnp.float32)
    return gamma, beta, mean, var


def _run_case(key, *, in_planes, out_planes, expansion, stride,
              matmul_dtype, atol, rtol):
    N, H, W = 2, 16, 16
    planes = expansion * in_planes
    ks = jax.random.split(key, 9)
    p = {
        'w1': 0.1 * jax.random.normal(ks[0], (planes, in_planes, 1, 1), jnp.float32),
        'dw': 0.1 * jax.random.normal(ks[1], (planes, 1, 3, 3), jnp.float32),
        'w3': 0.1 * jax.random.normal(ks[2], (out_planes, planes, 1, 1), jnp.float32),
        'wsc': 0.1 * jax.random.normal(ks[3], (out_planes, in_planes, 1, 1), jnp.float32),
        'bn1': _bn_params(ks[4], planes),
        'bn2': _bn_params(ks[5], planes),
        'bn3': _bn_params(ks[6], out_planes),
        'bnsc': _bn_params(ks[7], out_planes),
    }
    x = jax.random.normal(ks[8], (N, in_planes, H, W), jnp.float32)

    fp = fold_block_params(p, stride=stride)
    out = block_forward_pallas(x, fp, stride=stride, matmul_dtype=matmul_dtype)
    out = jax.block_until_ready(out)
    ref = jax.block_until_ready(_reference_nchw(x, p, stride=stride))
    assert out.shape == ref.shape, (out.shape, ref.shape)
    err = float(jnp.max(jnp.abs(out - ref)))
    assert jnp.allclose(out, ref, rtol=rtol, atol=atol), err


if __name__ == "__main__":
    keys = jax.random.split(jax.random.PRNGKey(0), 4)

    # A) expand block with 1x1-conv shortcut, fp32 matmuls.
    _run_case(keys[0], in_planes=4, out_planes=8, expansion=6, stride=1,
              matmul_dtype=jnp.float32, atol=1e-3, rtol=1e-3)

    # B) same block, bf16 MXU operands (f32 accumulate, f32 shortcut path).
    _run_case(keys[1], in_planes=4, out_planes=8, expansion=6, stride=1,
              matmul_dtype=jnp.bfloat16, atol=5e-2, rtol=5e-2)

    # C) stride-2 block (no shortcut), f32 to check the decimation exactly.
    _run_case(keys[2], in_planes=8, out_planes=8, expansion=4, stride=2,
              matmul_dtype=jnp.float32, atol=1e-3, rtol=1e-3)

    # D) identity-shortcut block (in_planes == out_planes), default bf16 path.
    _run_case(keys[3], in_planes=8, out_planes=8, expansion=4, stride=1,
              matmul_dtype=jnp.bfloat16, atol=5e-2, rtol=5e-2)

    print("KERNEL_OK")
</pallas_src>

<mosaic_0001>
module attributes {stable_mosaic.version = 11 : i64} {
  func.func @_block_kernel(%arg0: i32, %arg1: memref<1x4x256xf32, #tpu.memory_space<vmem>>, %arg2: memref<24x4xf32, #tpu.memory_space<vmem>>, %arg3: memref<24x1xf32, #tpu.memory_space<vmem>>, %arg4: memref<24x9xf32, #tpu.memory_space<vmem>>, %arg5: memref<24x1xf32, #tpu.memory_space<vmem>>, %arg6: memref<8x24xf32, #tpu.memory_space<vmem>>, %arg7: memref<8x1xf32, #tpu.memory_space<vmem>>, %arg8: memref<8x256xf32, #tpu.memory_space<vmem>>, %arg9: memref<8x4xf32, #tpu.memory_space<vmem>>, %arg10: memref<1x8x256xf32, #tpu.memory_space<vmem>>) attributes {dimension_semantics = [#tpu.dimension_semantics<parallel>], iteration_bounds = array<i64: 2>, scalar_prefetch = 0 : i64, scratch_operands = 0 : i64, tpu.core_type = #tpu.core_type<tc>, window_params = [{transform_indices = @transform_0, window_bounds = array<i64: 1, 4, 256>}, {pipeline_mode = #tpu.pipeline_mode<synchronous>, transform_indices = @transform_1, window_bounds = array<i64: 24, 4>}, {pipeline_mode = #tpu.pipeline_mode<synchronous>, transform_indices = @transform_2, window_bounds = array<i64: 24, 1>}, {pipeline_mode = #tpu.pipeline_mode<synchronous>, transform_indices = @transform_3, window_bounds = array<i64: 24, 9>}, {pipeline_mode = #tpu.pipeline_mode<synchronous>, transform_indices = @transform_4, window_bounds = array<i64: 24, 1>}, {pipeline_mode = #tpu.pipeline_mode<synchronous>, transform_indices = @transform_5, window_bounds = array<i64: 8, 24>}, {pipeline_mode = #tpu.pipeline_mode<synchronous>, transform_indices = @transform_6, window_bounds = array<i64: 8, 1>}, {pipeline_mode = #tpu.pipeline_mode<synchronous>, transform_indices = @transform_7, window_bounds = array<i64: 8, 256>}, {pipeline_mode = #tpu.pipeline_mode<synchronous>, transform_indices = @transform_8, window_bounds = array<i64: 8, 4>}, {transform_indices = @transform_9, window_bounds = array<i64: 1, 8, 256>}]} {
    %c0 = arith.constant 0 : index
    %c0_0 = arith.constant 0 : index
    %0 = vector.load %arg2[%c0, %c0_0] : memref<24x4xf32, #tpu.memory_space<vmem>>, vector<24x4xf32>
    %c0_1 = arith.constant 0 : index
    %c0_2 = arith.constant 0 : index
    %c0_3 = arith.constant 0 : index
    %1 = vector.load %arg1[%c0_1, %c0_2, %c0_3] : memref<1x4x256xf32, #tpu.memory_space<vmem>>, vector<1x4x256xf32>
    %2 = vector.shape_cast %1 : vector<1x4x256xf32> to vector<4x256xf32>
    %cst = arith.constant dense<0.000000e+00> : vector<24x256xf32>
    %3 = tpu.matmul %0, %2, %cst {dimension_numbers = #tpu.dot_dimension_numbers<[1], [0], [0], [1], [0, 0, 1, 1], [], []>} : vector<24x4xf32>, vector<4x256xf32>, vector<24x256xf32> -> vector<24x256xf32>
    %c0_4 = arith.constant 0 : index
    %c0_5 = arith.constant 0 : index
    %4 = vector.load %arg3[%c0_4, %c0_5] : memref<24x1xf32, #tpu.memory_space<vmem>>, vector<24x1xf32>
    %5 = vector.broadcast %4 : vector<24x1xf32> to vector<24x256xf32>
    %6 = arith.addf %3, %5 : vector<24x256xf32>
    %cst_6 = arith.constant 0.000000e+00 : f32
    %7 = vector.broadcast %cst_6 : f32 to vector<24x256xf32>
    %8 = arith.maximumf %6, %7 : vector<24x256xf32>
    %c0_7 = arith.constant 0 : index
    %c0_8 = arith.constant 0 : index
    %9 = vector.load %arg4[%c0_7, %c0_8] : memref<24x9xf32, #tpu.memory_space<vmem>>, vector<24x9xf32>
    %c0_9 = arith.constant 0 : index
    %c0_10 = arith.constant 0 : index
    %10 = vector.load %arg8[%c0_9, %c0_10] : memref<8x256xf32, #tpu.memory_space<vmem>>, vector<8x256xf32>
    %11 = vector.extract_strided_slice %9 {offsets = [0, 4], sizes = [24, 1], strides = [1, 1]} : vector<24x9xf32> to vector<24x1xf32>
    %12 = vector.broadcast %11 : vector<24x1xf32> to vector<24x256xf32>
    %13 = arith.mulf %8, %12 : vector<24x256xf32>
    %c17_i32 = arith.constant 17 : i32
    %14 = tpu.dynamic_rotate %8 by %c17_i32 dim 1 : vector<24x256xf32>, i32 -> vector<24x256xf32>
    %15 = vector.extract_strided_slice %10 {offsets = [0, 0], sizes = [1, 256], strides = [1, 1]} : vector<8x256xf32> to vector<1x256xf32>
    %16 = vector.broadcast %15 : vector<1x256xf32> to vector<24x256xf32>
    %17 = arith.mulf %14, %16 : vector<24x256xf32>
    %18 = vector.extract_strided_slice %9 {offsets = [0, 0], sizes = [24, 1], strides = [1, 1]} : vector<24x9xf32> to vector<24x1xf32>
    %19 = vector.broadcast %18 : vector<24x1xf32> to vector<24x256xf32>
    %20 = arith.mulf %17, %19 : vector<24x256xf32>
    %21 = arith.addf %13, %20 : vector<24x256xf32>
    %c16_i32 = arith.constant 16 : i32
    %22 = tpu.dynamic_rotate %8 by %c16_i32 dim 1 : vector<24x256xf32>, i32 -> vector<24x256xf32>
    %23 = vector.extract_strided_slice %10 {offsets = [1, 0], sizes = [1, 256], strides = [1, 1]} : vector<8x256xf32> to vector<1x256xf32>
    %24 = vector.broadcast %23 : vector<1x256xf32> to vector<24x256xf32>
    %25 = arith.mulf %22, %24 : vector<24x256xf32>
    %26 = vector.extract_strided_slice %9 {offsets = [0, 1], sizes = [24, 1], strides = [1, 1]} : vector<24x9xf32> to vector<24x1xf32>
    %27 = vector.broadcast %26 : vector<24x1xf32> to vector<24x256xf32>
    %28 = arith.mulf %25, %27 : vector<24x256xf32>
    %29 = arith.addf %21, %28 : vector<24x256xf32>
    %c15_i32 = arith.constant 15 : i32
    %30 = tpu.dynamic_rotate %8 by %c15_i32 dim 1 : vector<24x256xf32>, i32 -> vector<24x256xf32>
    %31 = vector.extract_strided_slice %10 {offsets = [2, 0], sizes = [1, 256], strides = [1, 1]} : vector<8x256xf32> to vector<1x256xf32>
    %32 = vector.broadcast %31 : vector<1x256xf32> to vector<24x256xf32>
    %33 = arith.mulf %30, %32 : vector<24x256xf32>
    %34 = vector.extract_strided_slice %9 {offsets = [0, 2], sizes = [24, 1], strides = [1, 1]} : vector<24x9xf32> to vector<24x1xf32>
    %35 = vector.broadcast %34 : vector<24x1xf32> to vector<24x256xf32>
    %36 = arith.mulf %33, %35 : vector<24x256xf32>
    %37 = arith.addf %29, %36 : vector<24x256xf32>
    %c1_i32 = arith.constant 1 : i32
    %38 = tpu.dynamic_rotate %8 by %c1_i32 dim 1 : vector<24x256xf32>, i32 -> vector<24x256xf32>
    %39 = vector.extract_strided_slice %10 {offsets = [3, 0], sizes = [1, 256], strides = [1, 1]} : vector<8x256xf32> to vector<1x256xf32>
    %40 = vector.broadcast %39 : vector<1x256xf32> to vector<24x256xf32>
    %41 = arith.mulf %38, %40 : vector<24x256xf32>
    %42 = vector.extract_strided_slice %9 {offsets = [0, 3], sizes = [24, 1], strides = [1, 1]} : vector<24x9xf32> to vector<24x1xf32>
    %43 = vector.broadcast %42 : vector<24x1xf32> to vector<24x256xf32>
    %44 = arith.mulf %41, %43 : vector<24x256xf32>
    %45 = arith.addf %37, %44 : vector<24x256xf32>
    %c255_i32 = arith.constant 255 : i32
    %46 = tpu.dynamic_rotate %8 by %c255_i32 dim 1 : vector<24x256xf32>, i32 -> vector<24x256xf32>
    %47 = vector.extract_strided_slice %10 {offsets = [4, 0], sizes = [1, 256], strides = [1, 1]} : vector<8x256xf32> to vector<1x256xf32>
    %48 = vector.broadcast %47 : vector<1x256xf32> to vector<24x256xf32>
    %49 = arith.mulf %46, %48 : vector<24x256xf32>
    %50 = vector.extract_strided_slice %9 {offsets = [0, 5], sizes = [24, 1], strides = [1, 1]} : vector<24x9xf32> to vector<24x1xf32>
    %51 = vector.broadcast %50 : vector<24x1xf32> to vector<24x256xf32>
    %52 = arith.mulf %49, %51 : vector<24x256xf32>
    %53 = arith.addf %45, %52 : vector<24x256xf32>
    %c241_i32 = arith.constant 241 : i32
    %54 = tpu.dynamic_rotate %8 by %c241_i32 dim 1 : vector<24x256xf32>, i32 -> vector<24x256xf32>
    %55 = vector.extract_strided_slice %10 {offsets = [5, 0], sizes = [1, 256], strides = [1, 1]} : vector<8x256xf32> to vector<1x256xf32>
    %56 = vector.broadcast %55 : vector<1x256xf32> to vector<24x256xf32>
    %57 = arith.mulf %54, %56 : vector<24x256xf32>
    %58 = vector.extract_strided_slice %9 {offsets = [0, 6], sizes = [24, 1], strides = [1, 1]} : vector<24x9xf32> to vector<24x1xf32>
    %59 = vector.broadcast %58 : vector<24x1xf32> to vector<24x256xf32>
    %60 = arith.mulf %57, %59 : vector<24x256xf32>
    %61 = arith.addf %53, %60 : vector<24x256xf32>
    %c240_i32 = arith.constant 240 : i32
    %62 = tpu.dynamic_rotate %8 by %c240_i32 dim 1 : vector<24x256xf32>, i32 -> vector<24x256xf32>
    %63 = vector.extract_strided_slice %10 {offsets = [6, 0], sizes = [1, 256], strides = [1, 1]} : vector<8x256xf32> to vector<1x256xf32>
    %64 = vector.broadcast %63 : vector<1x256xf32> to vector<24x256xf32>
    %65 = arith.mulf %62, %64 : vector<24x256xf32>
    %66 = vector.extract_strided_slice %9 {offsets = [0, 7], sizes = [24, 1], strides = [1, 1]} : vector<24x9xf32> to vector<24x1xf32>
    %67 = vector.broadcast %66 : vector<24x1xf32> to vector<24x256xf32>
    %68 = arith.mulf %65, %67 : vector<24x256xf32>
    %69 = arith.addf %61, %68 : vector<24x256xf32>
    %c239_i32 = arith.constant 239 : i32
    %70 = tpu.dynamic_rotate %8 by %c239_i32 dim 1 : vector<24x256xf32>, i32 -> vector<24x256xf32>
    %71 = vector.extract_strided_slice %10 {offsets = [7, 0], sizes = [1, 256], strides = [1, 1]} : vector<8x256xf32> to vector<1x256xf32>
    %72 = vector.broadcast %71 : vector<1x256xf32> to vector<24x256xf32>
    %73 = arith.mulf %70, %72 : vector<24x256xf32>
    %74 = vector.extract_strided_slice %9 {offsets = [0, 8], sizes = [24, 1], strides = [1, 1]} : vector<24x9xf32> to vector<24x1xf32>
    %75 = vector.broadcast %74 : vector<24x1xf32> to vector<24x256xf32>
    %76 = arith.mulf %73, %75 : vector<24x256xf32>
    %77 = arith.addf %69, %76 : vector<24x256xf32>
    %c0_11 = arith.constant 0 : index
    %c0_12 = arith.constant 0 : index
    %78 = vector.load %arg5[%c0_11, %c0_12] : memref<24x1xf32, #tpu.memory_space<vmem>>, vector<24x1xf32>
    %79 = vector.broadcast %78 : vector<24x1xf32> to vector<24x256xf32>
    %80 = arith.addf %77, %79 : vector<24x256xf32>
    %cst_13 = arith.constant 0.000000e+00 : f32
    %81 = vector.broadcast %cst_13 : f32 to vector<24x256xf32>
    %82 = arith.maximumf %80, %81 : vector<24x256xf32>
    %c0_14 = arith.constant 0 : index
    %c0_15 = arith.constant 0 : index
    %83 = vector.load %arg6[%c0_14, %c0_15] : memref<8x24xf32, #tpu.memory_space<vmem>>, vector<8x24xf32>
    %cst_16 = arith.constant dense<0.000000e+00> : vector<8x256xf32>
    %84 = tpu.matmul %83, %82, %cst_16 {dimension_numbers = #tpu.dot_dimension_numbers<[1], [0], [0], [1], [0, 0, 1, 1], [], []>} : vector<8x24xf32>, vector<24x256xf32>, vector<8x256xf32> -> vector<8x256xf32>
    %c0_17 = arith.constant 0 : index
    %c0_18 = arith.constant 0 : index
    %85 = vector.load %arg7[%c0_17, %c0_18] : memref<8x1xf32, #tpu.memory_space<vmem>>, vector<8x1xf32>
    %86 = vector.broadcast %85 : vector<8x1xf32> to vector<8x256xf32>
    %87 = arith.addf %84, %86 : vector<8x256xf32>
    %c0_19 = arith.constant 0 : index
    %c0_20 = arith.constant 0 : index
    %88 = vector.load %arg9[%c0_19, %c0_20] : memref<8x4xf32, #tpu.memory_space<vmem>>, vector<8x4xf32>
    %c0_21 = arith.constant 0 : index
    %c0_22 = arith.constant 0 : index
    %c0_23 = arith.constant 0 : index
    %89 = vector.load %arg1[%c0_21, %c0_22, %c0_23] : memref<1x4x256xf32, #tpu.memory_space<vmem>>, vector<1x4x256xf32>
    %90 = vector.shape_cast %89 : vector<1x4x256xf32> to vector<4x256xf32>
    %cst_24 = arith.constant dense<0.000000e+00> : vector<8x256xf32>
    %91 = tpu.matmul %88, %90, %cst_24 {dimension_numbers = #tpu.dot_dimension_numbers<[1], [0], [0], [1], [0, 0, 1, 1], [], []>} : vector<8x4xf32>, vector<4x256xf32>, vector<8x256xf32> -> vector<8x256xf32>
    %92 = arith.addf %87, %91 : vector<8x256xf32>
    %c0_25 = arith.constant 0 : index
    %c0_26 = arith.constant 0 : index
    %c0_27 = arith.constant 0 : index
    %93 = vector.load %arg10[%c0_25, %c0_26, %c0_27] : memref<1x8x256xf32, #tpu.memory_space<vmem>>, vector<1x8x256xf32>
    %94 = vector.shape_cast %93 : vector<1x8x256xf32> to vector<8x256xf32>
    %95 = vector.shape_cast %92 : vector<8x256xf32> to vector<1x8x256xf32>
    tpu.vector_store %arg10[%c0_25, %c0_26, %c0_27], %95 {strides = array<i32>} : memref<1x8x256xf32, #tpu.memory_space<vmem>>, vector<1x8x256xf32>,
    return
  }
  func.func @transform_0(%arg0: i32) -> (i32, i32, i32) {
    %c0_i32 = arith.constant 0 : i32
    %c0_i32_0 = arith.constant 0 : i32
    %c0_i32_1 = arith.constant 0 : i32
    return %arg0, %c0_i32, %c0_i32_0 : i32, i32, i32
  }
  func.func @transform_1(%arg0: i32) -> (i32, i32) {
    %c0_i32 = arith.constant 0 : i32
    %c0_i32_0 = arith.constant 0 : i32
    %c0_i32_1 = arith.constant 0 : i32
    return %c0_i32, %c0_i32_0 : i32, i32
  }
  func.func @transform_2(%arg0: i32) -> (i32, i32) {
    %c0_i32 = arith.constant 0 : i32
    %c0_i32_0 = arith.constant 0 : i32
    %c0_i32_1 = arith.constant 0 : i32
    return %c0_i32, %c0_i32_0 : i32, i32
  }
  func.func @transform_3(%arg0: i32) -> (i32, i32) {
    %c0_i32 = arith.constant 0 : i32
    %c0_i32_0 = arith.constant 0 : i32
    %c0_i32_1 = arith.constant 0 : i32
    return %c0_i32, %c0_i32_0 : i32, i32
  }
  func.func @transform_4(%arg0: i32) -> (i32, i32) {
    %c0_i32 = arith.constant 0 : i32
    %c0_i32_0 = arith.constant 0 : i32
    %c0_i32_1 = arith.constant 0 : i32
    return %c0_i32, %c0_i32_0 : i32, i32
  }
  func.func @transform_5(%arg0: i32) -> (i32, i32) {
    %c0_i32 = arith.constant 0 : i32
    %c0_i32_0 = arith.constant 0 : i32
    %c0_i32_1 = arith.constant 0 : i32
    return %c0_i32, %c0_i32_0 : i32, i32
  }
  func.func @transform_6(%arg0: i32) -> (i32, i32) {
    %c0_i32 = arith.constant 0 : i32
    %c0_i32_0 = arith.constant 0 : i32
    %c0_i32_1 = arith.constant 0 : i32
    return %c0_i32, %c0_i32_0 : i32, i32
  }
  func.func @transform_7(%arg0: i32) -> (i32, i32) {
    %c0_i32 = arith.constant 0 : i32
    %c0_i32_0 = arith.constant 0 : i32
    %c0_i32_1 = arith.constant 0 : i32
    return %c0_i32, %c0_i32_0 : i32, i32
  }
  func.func @transform_8(%arg0: i32) -> (i32, i32) {
    %c0_i32 = arith.constant 0 : i32
    %c0_i32_0 = arith.constant 0 : i32
    %c0_i32_1 = arith.constant 0 : i32
    return %c0_i32, %c0_i32_0 : i32, i32
  }
  func.func @transform_9(%arg0: i32) -> (i32, i32, i32) {
    %c0_i32 = arith.constant 0 : i32
    %c0_i32_0 = arith.constant 0 : i32
    %c0_i32_1 = arith.constant 0 : i32
    return %arg0, %c0_i32, %c0_i32_0 : i32, i32, i32
  }
}

</mosaic_0001>

<llo_original>
// kernel: tpu_custom_call.1
$region0: #{tpu_custom_call.1}
  #allocation0 [shape = 'u32[]', space=smem, size = 0x4, offset = 0x4, fixed_abs, tag = 'smem constant byte address 0x4 - core index']
  #allocation1 [shape = 'u32[72,128]{1,0:T(1,128)}', space=vmem, size = 0x9000, scoped, tag = 'internal scratch']
  %s0 = inlined_call_operand.vmem [shape: f32[2,4,256], index: 0, kind: input, shape index: {}]
  %s1 = inlined_call_operand.vmem [shape: f32[24,4], index: 1, kind: input, shape index: {}]
  %s2 = inlined_call_operand.vmem [shape: f32[24,1], index: 2, kind: input, shape index: {}]
  %s3 = inlined_call_operand.vmem [shape: f32[24,9], index: 3, kind: input, shape index: {}]
  %s4 = inlined_call_operand.vmem [shape: f32[24,1], index: 4, kind: input, shape index: {}]
  %s5 = inlined_call_operand.vmem [shape: f32[8,24], index: 5, kind: input, shape index: {}]
  %s6 = inlined_call_operand.vmem [shape: f32[8,1], index: 6, kind: input, shape index: {}]
  %s7 = inlined_call_operand.vmem [shape: f32[8,256], index: 7, kind: input, shape index: {}]
  %s8 = inlined_call_operand.vmem [shape: f32[8,4], index: 8, kind: input, shape index: {}]
  %s9 = inlined_call_operand.hbm [shape: f32[2,8,256], index: 9, kind: output, shape index: {}]
  %s10 = sld [smem:[#allocation0]]
  $region69: #{tpu_custom_call.1} parent=0
    _
  %s12 = ssub.s32 1, %s10
  %s13 = scalar_select 0, %s12, %s10
  $region1: #{tpu_custom_call.1} parent=0
    #allocation2 [shape = 'u8[16384]{0}', space=vmem, size = 0x4000, scoped, tag = 'output window, operand 0']
    #allocation3 [shape = 's32[2]{0}', space=sflag, size = 0x8, scoped, tag = 'scoped memory for tpu_custom_call.1']
    %14 = vsyncpa [#allocation3], 0
    %s15 = scalar_lea.sflag [#allocation3], 1
    %16 = vsyncpa %s15, 0
    loop: start=0, step=1, limit=4
    $region2: #{tpu_custom_call.1} parent=1 // loop_pre_header
      _
    $region3: #{tpu_custom_call.1} parent=1 // loop_header
      %s18 = sphi 0, %s22
      %p19 = scmp.ge.s32.totalorder %s18, 4
      %s28 = sphi 0, %s30
      %s31 = sphi 0, %s28
      %s32 = sphi 0, %s31
      %s48 = sphi 0, %s32
      %s52 = sphi 0, %s52
      %s54 = sphi 0, %s52
      %s55 = sphi 0, %s54
      %s69 = sphi 0, %s55
      %s73 = sphi 0, %s73
      %s75 = sphi 0, %s73
      %s76 = sphi 0, %s75
      %s90 = sphi 0, %s76
      %s94 = sphi 0, %s94
      %s96 = sphi 0, %s94
      %s97 = sphi 0, %s96
      %s111 = sphi 0, %s97
      %s115 = sphi 0, %s115
      %s117 = sphi 0, %s115
      %s118 = sphi 0, %s117
      %s132 = sphi 0, %s118
      %s136 = sphi 0, %s136
      %s138 = sphi 0, %s136
      %s139 = sphi 0, %s138
      %s153 = sphi 0, %s139
      %s157 = sphi 0, %s157
      %s159 = sphi 0, %s157
      %s160 = sphi 0, %s159
      %s174 = sphi 0, %s160
      %s178 = sphi 0, %s178
      %s180 = sphi 0, %s178
      %s181 = sphi 0, %s180
      %s195 = sphi 0, %s181
      %s199 = sphi 0, %s199
      %s201 = sphi 0, %s199
      %s202 = sphi 0, %s201
      %s216 = sphi 0, %s202
      %s222 = sphi 0, %s224
      %s225 = sphi 0, %s222
      %s226 = sphi 0, %s225
      %s242 = sphi 0, %s226
    $region4: #{tpu_custom_call.1} parent=1 // loop_header_branch
      %21 = sbr.rel (%p19) target = $region8
    $region5: #{tpu_custom_call.1} parent=1 // loop_body
      %s23 = ssub.s32 %s18, 1
      %s24 = ssub.s32 %s18, 2
      %s25 = sadd.s32 %s18, 1
      %s26 = ssub.s32 %s18, %s25
      %p27 = scmp.eq.s32.totalorder %s26, 0
      %s29 = sadd.s32 %s28, 1
      %s30 = scalar_select %p27, %s28, %s29
      %p33 = pneg %p27
      %p34 = scmp.eq.s32.totalorder %s18, 1
      %p35 = por %p33, %p34
      %p36 = scmp.ne.s32.totalorder %s28, %s31
      %p37 = scmp.eq.s32.totalorder %s18, 0
      %p38 = por %p36, %p37
      %p39 = scmp.ne.s32.totalorder %s28, %s31
      %p40 = scmp.eq.s32.totalorder %s23, 1
      %p41 = por %p39, %p40
      %p42 = scmp.ne.s32.totalorder %s31, %s32
      %p43 = scmp.eq.s32.totalorder %s23, 0
      %p44 = por %p42, %p43
      %p45 = scmp.ne.s32.totalorder %s31, %s32
      %p46 = scmp.eq.s32.totalorder %s24, 1
      %p47 = por %p45, %p46
      %p49 = scmp.ne.s32.totalorder %s32, %s48
      %p50 = scmp.eq.s32.totalorder %s24, 0
      %p51 = por %p49, %p50
      %s53 = sadd.s32 %s52, 1
      %p56 = scmp.eq.s32.totalorder %s18, 1
      %p57 = scmp.ne.s32.totalorder %s52, %s54
      %p58 = scmp.eq.s32.totalorder %s18, 0
      %p59 = por %p57, %p58
      %p60 = scmp.ne.s32.totalorder %s52, %s54
      %p61 = scmp.eq.s32.totalorder %s23, 1
      %p62 = por %p60, %p61
      %p63 = scmp.ne.s32.totalorder %s54, %s55
      %p64 = scmp.eq.s32.totalorder %s23, 0
      %p65 = por %p63, %p64
      %p66 = scmp.ne.s32.totalorder %s54, %s55
      %p67 = scmp.eq.s32.totalorder %s24, 1
      %p68 = por %p66, %p67
      %p70 = scmp.ne.s32.totalorder %s55, %s69
      %p71 = scmp.eq.s32.totalorder %s24, 0
      %p72 = por %p70, %p71
      %s74 = sadd.s32 %s73, 1
      %p77 = scmp.eq.s32.totalorder %s18, 1
      %p78 = scmp.ne.s32.totalorder %s73, %s75
      %p79 = scmp.eq.s32.totalorder %s18, 0
      %p80 = por %p78, %p79
      %p81 = scmp.ne.s32.totalorder %s73, %s75
      %p82 = scmp.eq.s32.totalorder %s23, 1
      %p83 = por %p81, %p82
      %p84 = scmp.ne.s32.totalorder %s75, %s76
      %p85 = scmp.eq.s32.totalorder %s23, 0
      %p86 = por %p84, %p85
      %p87 = scmp.ne.s32.totalorder %s75, %s76
      %p88 = scmp.eq.s32.totalorder %s24, 1
      %p89 = por %p87, %p88
      %p91 = scmp.ne.s32.totalorder %s76, %s90
      %p92 = scmp.eq.s32.totalorder %s24, 0
      %p93 = por %p91, %p92
      %s95 = sadd.s32 %s94, 1
      %p98 = scmp.eq.s32.totalorder %s18, 1
      %p99 = scmp.ne.s32.totalorder %s94, %s96
      %p100 = scmp.eq.s32.totalorder %s18, 0
      %p101 = por %p99, %p100
      %p102 = scmp.ne.s32.totalorder %s94, %s96
      %p103 = scmp.eq.s32.totalorder %s23, 1
      %p104 = por %p102, %p103
      %p105 = scmp.ne.s32.totalorder %s96, %s97
      %p106 = scmp.eq.s32.totalorder %s23, 0
      %p107 = por %p105, %p106
      %p108 = scmp.ne.s32.totalorder %s96, %s97
      %p109 = scmp.eq.s32.totalorder %s24, 1
      %p110 = por %p108, %p109
      %p112 = scmp.ne.s32.totalorder %s97, %s111
      %p113 = scmp.eq.s32.totalorder %s24, 0
      %p114 = por %p112, %p113
      %s116 = sadd.s32 %s115, 1
      %p119 = scmp.eq.s32.totalorder %s18, 1
      %p120 = scmp.ne.s32.totalorder %s115, %s117
      %p121 = scmp.eq.s32.totalorder %s18, 0
      %p122 = por %p120, %p121
      %p123 = scmp.ne.s32.totalorder %s115, %s117
      %p124 = scmp.eq.s32.totalorder %s23, 1
      %p125 = por %p123, %p124
      %p126 = scmp.ne.s32.totalorder %s117, %s118
      %p127 = scmp.eq.s32.totalorder %s23, 0
      %p128 = por %p126, %p127
      %p129 = scmp.ne.s32.totalorder %s117, %s118
      %p130 = scmp.eq.s32.totalorder %s24, 1
      %p131 = por %p129, %p130
      %p133 = scmp.ne.s32.totalorder %s118, %s132
      %p134 = scmp.eq.s32.totalorder %s24, 0
      %p135 = por %p133, %p134
      %s137 = sadd.s32 %s136, 1
      %p140 = scmp.eq.s32.totalorder %s18, 1
      %p141 = scmp.ne.s32.totalorder %s136, %s138
      %p142 = scmp.eq.s32.totalorder %s18, 0
      %p143 = por %p141, %p142
      %p144 = scmp.ne.s32.totalorder %s136, %s138
      %p145 = scmp.eq.s32.totalorder %s23, 1
      %p146 = por %p144, %p145
      %p147 = scmp.ne.s32.totalorder %s138, %s139
      %p148 = scmp.eq.s32.totalorder %s23, 0
      %p149 = por %p147, %p148
      %p150 = scmp.ne.s32.totalorder %s138, %s139
      %p151 = scmp.eq.s32.totalorder %s24, 1
      %p152 = por %p150, %p151
      %p154 = scmp.ne.s32.totalorder %s139, %s153
      %p155 = scmp.eq.s32.totalorder %s24, 0
      %p156 = por %p154, %p155
      %s158 = sadd.s32 %s157, 1
      %p161 = scmp.eq.s32.totalorder %s18, 1
      %p162 = scmp.ne.s32.totalorder %s157, %s159
      %p163 = scmp.eq.s32.totalorder %s18, 0
      %p164 = por %p162, %p163
      %p165 = scmp.ne.s32.totalorder %s157, %s159
      %p166 = scmp.eq.s32.totalorder %s23, 1
      %p167 = por %p165, %p166
      %p168 = scmp.ne.s32.totalorder %s159, %s160
      %p169 = scmp.eq.s32.totalorder %s23, 0
      %p170 = por %p168, %p169
      %p171 = scmp.ne.s32.totalorder %s159, %s160
      %p172 = scmp.eq.s32.totalorder %s24, 1
      %p173 = por %p171, %p172
      %p175 = scmp.ne.s32.totalorder %s160, %s174
      %p176 = scmp.eq.s32.totalorder %s24, 0
      %p177 = por %p175, %p176
      %s179 = sadd.s32 %s178, 1
      %p182 = scmp.eq.s32.totalorder %s18, 1
      %p183 = scmp.ne.s32.totalorder %s178, %s180
      %p184 = scmp.eq.s32.totalorder %s18, 0
      %p185 = por %p183, %p184
      %p186 = scmp.ne.s32.totalorder %s178, %s180
      %p187 = scmp.eq.s32.totalorder %s23, 1
      %p188 = por %p186, %p187
      %p189 = scmp.ne.s32.totalorder %s180, %s181
      %p190 = scmp.eq.s32.totalorder %s23, 0
      %p191 = por %p189, %p190
      %p192 = scmp.ne.s32.totalorder %s180, %s181
      %p193 = scmp.eq.s32.totalorder %s24, 1
      %p194 = por %p192, %p193
      %p196 = scmp.ne.s32.totalorder %s181, %s195
      %p197 = scmp.eq.s32.totalorder %s24, 0
      %p198 = por %p196, %p197
      %s200 = sadd.s32 %s199, 1
      %p203 = scmp.eq.s32.totalorder %s18, 1
      %p204 = scmp.ne.s32.totalorder %s199, %s201
      %p205 = scmp.eq.s32.totalorder %s18, 0
      %p206 = por %p204, %p205
      %p207 = scmp.ne.s32.totalorder %s199, %s201
      %p208 = scmp.eq.s32.totalorder %s23, 1
      %p209 = por %p207, %p208
      %p210 = scmp.ne.s32.totalorder %s201, %s202
      %p211 = scmp.eq.s32.totalorder %s23, 0
      %p212 = por %p210, %p211
      %p213 = scmp.ne.s32.totalorder %s201, %s202
      %p214 = scmp.eq.s32.totalorder %s24, 1
      %p215 = por %p213, %p214
      %p217 = scmp.ne.s32.totalorder %s202, %s216
      %p218 = scmp.eq.s32.totalorder %s24, 0
      %p219 = por %p217, %p218
      %s220 = ssub.s32 %s18, %s25
      %p221 = scmp.eq.s32.totalorder %s220, 0
      %s223 = sadd.s32 %s222, 1
      %s224 = scalar_select %p221, %s222, %s223
      %p227 = pneg %p221
      %p228 = scmp.eq.s32.totalorder %s18, 1
      %p229 = por %p227, %p228
      %p230 = scmp.ne.s32.totalorder %s222, %s225
      %p231 = scmp.eq.s32.totalorder %s18, 0
      %p232 = por %p230, %p231
      %p233 = scmp.ne.s32.totalorder %s222, %s225
      %p234 = scmp.eq.s32.totalorder %s23, 1
      %p235 = por %p233, %p234
      %p236 = scmp.ne.s32.totalorder %s225, %s226
      %p237 = scmp.eq.s32.totalorder %s23, 0
      %p238 = por %p236, %p237
      %p239 = scmp.ne.s32.totalorder %s225, %s226
      %p240 = scmp.eq.s32.totalorder %s24, 1
      %p241 = por %p239, %p240
      %p243 = scmp.ne.s32.totalorder %s226, %s242
      %p244 = scmp.eq.s32.totalorder %s24, 0
      %p245 = por %p243, %p244
      %p246 = scmp.le.s32.totalorder 1, %s18
      %p247 = scmp.lt.s32.totalorder %s18, 3
      %p248 = pnand %p246, %p247
      %p249 = pneg %p248
      // Predicated region
      $region9: #{tpu_custom_call.1} parent=5 // pred_check
        _
      $region10: #{tpu_custom_call.1} parent=5 // pred_check_branch
        %251 = sbr.rel (%p248) target = $region12
      $region11: #{tpu_custom_call.1} parent=5 // pred_region
        %s252 = ssub.s32 %s18, 1
        // Predicated region
        $region13: #{tpu_custom_call.1} parent=11 // pred_check
          %p253 = pneg %p65
        $region14: #{tpu_custom_call.1} parent=11 // pred_check_branch
          %255 = sbr.rel (%p253) target = $region16
        $region15: #{tpu_custom_call.1} parent=11 // pred_region
          _
        $region16: #{tpu_custom_call.1} parent=11 // pred_fallthru
          _
        // Predicated region
        $region17: #{tpu_custom_call.1} parent=11 // pred_check
          %p256 = pneg %p86
        $region18: #{tpu_custom_call.1} parent=11 // pred_check_branch
          %258 = sbr.rel (%p256) target = $region20
        $region19: #{tpu_custom_call.1} parent=11 // pred_region
          _
        $region20: #{tpu_custom_call.1} parent=11 // pred_fallthru
          _
        // Predicated region
        $region21: #{tpu_custom_call.1} parent=11 // pred_check
          %p259 = pneg %p107
        $region22: #{tpu_custom_call.1} parent=11 // pred_check_branch
          %261 = sbr.rel (%p259) target = $region24
        $region23: #{tpu_custom_call.1} parent=11 // pred_region
          _
        $region24: #{tpu_custom_call.1} parent=11 // pred_fallthru
          _
        // Predicated region
        $region25: #{tpu_custom_call.1} parent=11 // pred_check
          %p262 = pneg %p128
        $region26: #{tpu_custom_call.1} parent=11 // pred_check_branch
          %264 = sbr.rel (%p262) target = $region28
        $region27: #{tpu_custom_call.1} parent=11 // pred_region
          _
        $region28: #{tpu_custom_call.1} parent=11 // pred_fallthru
          _
        // Predicated region
        $region29: #{tpu_custom_call.1} parent=11 // pred_check
          %p265 = pneg %p149
        $region30: #{tpu_custom_call.1} parent=11 // pred_check_branch
          %267 = sbr.rel (%p265) target = $region32
        $region31: #{tpu_custom_call.1} parent=11 // pred_region
          _
        $region32: #{tpu_custom_call.1} parent=11 // pred_fallthru
          _
        // Predicated region
        $region33: #{tpu_custom_call.1} parent=11 // pred_check
          %p268 = pneg %p170
        $region34: #{tpu_custom_call.1} parent=11 // pred_check_branch
          %270 = sbr.rel (%p268) target = $region36
        $region35: #{tpu_custom_call.1} parent=11 // pred_region
          _
        $region36: #{tpu_custom_call.1} parent=11 // pred_fallthru
          _
        // Predicated region
        $region37: #{tpu_custom_call.1} parent=11 // pred_check
          %p271 = pneg %p191
        $region38: #{tpu_custom_call.1} parent=11 // pred_check_branch
          %273 = sbr.rel (%p271) target = $region40
        $region39: #{tpu_custom_call.1} parent=11 // pred_region
          _
        $region40: #{tpu_custom_call.1} parent=11 // pred_fallthru
          _
        // Predicated region
        $region41: #{tpu_custom_call.1} parent=11 // pred_check
          %p274 = pneg %p212
        $region42: #{tpu_custom_call.1} parent=11 // pred_check_branch
          %276 = sbr.rel (%p274) target = $region44
        $region43: #{tpu_custom_call.1} parent=11 // pred_region
          _
        $region44: #{tpu_custom_call.1} parent=11 // pred_fallthru
          _
      $region12: #{tpu_custom_call.1} parent=5 // pred_fallthru
        _
      %p277 = scmp.lt.s32.totalorder %s18, 2
      // Predicated region
      $region45: #{tpu_custom_call.1} parent=5 // pred_check
        %p278 = pneg %p277
      $region46: #{tpu_custom_call.1} parent=5 // pred_check_branch
        %280 = sbr.rel (%p278) target = $region48
      $region47: #{tpu_custom_call.1} parent=5 // pred_region
        // Predicated region
        $region49: #{tpu_custom_call.1} parent=47 // pred_check
          %p281 = pneg %p38
        $region50: #{tpu_custom_call.1} parent=47 // pred_check_branch
          %283 = sbr.rel (%p281) target = $region52
        $region51: #{tpu_custom_call.1} parent=47 // pred_region
          %p284 = scmp.lt.s32.totalorder %s18, 1
          %s285 = scalar_select %p284, %s18, 1
          %s286 = smul.addr %s285, 2
          %s287 = smul.addr %s286, 4
          %s288 = scalar_lea.vmem %s0, %s287
        $region52: #{tpu_custom_call.1} parent=47 // pred_fallthru
          _
      $region48: #{tpu_custom_call.1} parent=5 // pred_fallthru
        _
      %p289 = scmp.le.s32.totalorder 1, %s18
      %p290 = scmp.lt.s32.totalorder %s18, 3
      %p291 = pnand %p289, %p290
      %p292 = pneg %p291
      // Predicated region
      $region53: #{tpu_custom_call.1} parent=5 // pred_check
        _
      $region54: #{tpu_custom_call.1} parent=5 // pred_check_branch
        %294 = sbr.rel (%p291) target = $region56
      $region55: #{tpu_custom_call.1} parent=5 // pred_region
        %s295 = ssub.s32 %s18, 1
        %p296 = scmp.lt.s32.totalorder %s23, 1
        %s297 = scalar_select %p296, %s23, 1
        %s298 = smul.addr %s297, 2
        %s299 = smul.addr %s298, 4
        %s300 = scalar_lea.vmem %s0, %s299
        %p301 = pneg %p44
        %p302 = pneg %p41
        %p303 = pneg %p65
        %p304 = pneg %p62
        %p305 = pneg %p86
        %p306 = pneg %p83
        %p307 = pneg %p107
        %p308 = pneg %p104
        %p309 = pneg %p128
        %p310 = pneg %p125
        %p311 = pneg %p149
        %p312 = pneg %p146
        %p313 = pneg %p170
        %p314 = pneg %p167
        %p315 = pneg %p191
        %p316 = pneg %p188
        %p317 = pneg %p212
        %p318 = pneg %p209
        %p319 = pneg %p238
        %p320 = pneg %p235
        %s321 = sand.u32 %s225, 1
        %s322 = scalar_lea.sflag [#allocation3], %s321
        %s323 = sand.u32 %s225, 1
        %s324 = smul.addr %s323, 16
        %s325 = scalar_lea.vmem [#allocation2], %s324
        %p326 = scmp.lt.s32.totalorder %s23, 1
        %s327 = scalar_select %p326, %s23, 1
        %s328 = smul.addr %s327, 2
        %s329 = smul.addr %s328, 4
        %s330 = scalar_lea.vmem %s0, %s329
        %v331 = vld [vmem:[%s1] sm:$0xff]
        %v332 = vld [vmem:[%s1 + $0x8] sm:$0xff]
        %v333 = vld [vmem:[%s1 + $0x10] sm:$0xff]
        %v334 = vld [vmem:[%s330] sm:$0xff]
        %v335 = vld [vmem:[%s2] sm:$0xff]
        %v336 = vld [vmem:[%s2 + $0x8] sm:$0xff]
        %v337 = vld [vmem:[%s2 + $0x10] sm:$0xff]
        %339 = vset.pattern.permute.xlu0 0
        %340 = vperm.xlu0 %339, %v335
        %v341 = vpop.permute.xlu0 %340
        %344 = vset.pattern.permute.xlu0 0
        %345 = vperm.xlu0 %344, %v336
        %v346 = vpop.permute.xlu0 %345
        %349 = vset.pattern.permute.xlu0 0
        %350 = vperm.xlu0 %349, %v337
        %v351 = vpop.permute.xlu0 %350
        %354 = vst [vmem:[#allocation1] ss:$2 sm:$0xff] %v334
        %v355 = vld.sshfl [vmem:[#allocation1] sm:$0xff pattern:$0x75316420]
        %v356 = vld.sshfl [vmem:[#allocation1 + $0x8] sm:$0xff pattern:$0x75316420]
        %vm357 = vcmask 31744
        %v359 = vsel %vm357, %v331, 0
        %v362 = vsel %vm357, %v332, 0
        %v365 = vsel %vm357, %v333, 0
        %vm367 = vcmask 1043456
        %v368 = vsel %vm367, %v355, 0
        %v370 = vsel %vm367, %v356, 0
        %372 = vmatpush.msra.mxu0 0.0
        %373 = vmatpush.msra.mxu0 0.0
        %374 = vmatpush.msra.mxu0 0.0
        %375 = vmatpush.msra.mxu0 0.0
        %376 = vmatpush.msra.mxu0 0.0
        %377 = vmatpush.msra.mxu0 0.0
        %378 = vmatpush.msra.mxu0 0.0
        %379 = vmatpush.msra.mxu0 0.0
        %380 = vmatpush.msra.mxu0 0.0
        %381 = vmatpush.msra.mxu0 0.0
        %382 = vmatpush.msra.mxu0 0.0
        %383 = vmatpush.msra.mxu0 0.0
        %384 = vmatpush.msra.mxu0 0.0
        %385 = vmatpush.msra.mxu0 0.0
        %386 = vmatpush.msra.mxu0 0.0
        %387 = vmatpush.msra.mxu0 %v368
        %388 = vmatmul.f32.gmra.mxu0 %v359
        %v389 = vpop.f32.mrf.mxu0
        %v390 = vadd.f32 %v341, %v389
        %391 = vmatmul.f32.gmra.mxu0 %v362
        %v392 = vpop.f32.mrf.mxu0
        %v393 = vadd.f32 %v346, %v392
        %394 = vmatmul.f32.gmra.mxu0 %v365
        %v395 = vpop.f32.mrf.mxu0
        %v396 = vadd.f32 %v351, %v395
        %397 = vdwg.mxu0
        %398 = vmatpush.msra.mxu0 0.0
        %399 = vmatpush.msra.mxu0 0.0
        %400 = vmatpush.msra.mxu0 0.0
        %401 = vmatpush.msra.mxu0 0.0
        %402 = vmatpush.msra.mxu0 0.0
        %403 = vmatpush.msra.mxu0 0.0
        %404 = vmatpush.msra.mxu0 0.0
        %405 = vmatpush.msra.mxu0 0.0
        %406 = vmatpush.msra.mxu0 0.0
        %407 = vmatpush.msra.mxu0 0.0
        %408 = vmatpush.msra.mxu0 0.0
        %409 = vmatpush.msra.mxu0 0.0
        %410 = vmatpush.msra.mxu0 0.0
        %411 = vmatpush.msra.mxu0 0.0
        %412 = vmatpush.msra.mxu0 0.0
        %413 = vmatpush.msra.mxu0 %v370
        %414 = vmatmul.f32.gmra.mxu0 %v359
        %v415 = vpop.f32.mrf.mxu0
        %v416 = vadd.f32 %v341, %v415
        %417 = vmatmul.f32.gmra.mxu0 %v362
        %v418 = vpop.f32.mrf.mxu0
        %v419 = vadd.f32 %v346, %v418
        %420 = vmatmul.f32.gmra.mxu0 %v365
        %v421 = vpop.f32.mrf.mxu0
        %v422 = vadd.f32 %v351, %v421
        %423 = vdwg.mxu0
        %v424 = vmax.f32 %v390, 0.0
        %v425 = vmax.f32 %v416, 0.0
        %v426 = vmax.f32 %v393, 0.0
        %v427 = vmax.f32 %v419, 0.0
        %v428 = vmax.f32 %v396, 0.0
        %v429 = vmax.f32 %v422, 0.0
        %v430 = vld [vmem:[%s3] sm:$0xff]
        %v431 = vld [vmem:[%s3 + $0x8] sm:$0xff]
        %v432 = vld [vmem:[%s3 + $0x10] sm:$0xff]
        %v433 = vld [vmem:[%s7] sm:$0xff]
        %v434 = vld [vmem:[%s7 + $0x8] sm:$0xff]
        %436 = vset.pattern.permute.xlu0 4
        %437 = vperm.xlu0 %436, %v430
        %v438 = vpop.permute.xlu0 %437
        %441 = vset.pattern.permute.xlu0 4
        %442 = vperm.xlu0 %441, %v431
        %v443 = vpop.permute.xlu0 %442
        %446 = vset.pattern.permute.xlu0 4
        %447 = vperm.xlu0 %446, %v432
        %v448 = vpop.permute.xlu0 %447
        %v450 = vmul.f32 %v424, %v438
        %v451 = vmul.f32 %v425, %v438
        %v452 = vmul.f32 %v426, %v443
        %v453 = vmul.f32 %v427, %v443
        %v454 = vmul.f32 %v428, %v448
        %v455 = vmul.f32 %v429, %v448
        %456 = vrot.lane.b32.xlu0 %v424, 17
        %v457 = vpop.permute.xlu0 %456
        %458 = vrot.lane.b32.xlu0 %v426, 17
        %v459 = vpop.permute.xlu0 %458
        %460 = vrot.lane.b32.xlu0 %v428, 17
        %v461 = vpop.permute.xlu0 %460
        %462 = vrot.lane.b32.xlu0 %v425, 17
        %v463 = vpop.permute.xlu0 %462
        %464 = vrot.lane.b32.xlu0 %v427, 17
        %v465 = vpop.permute.xlu0 %464
        %466 = vrot.lane.b32.xlu0 %v429, 17
        %v467 = vpop.permute.xlu0 %466
        %v468 = vlaneseq
        %v469 = vand.u32 %v468, 127
        %vm470 = vcmp.lt.s32.totalorder %v469, 17
        %v471 = vsel %vm470, %v457, %v463
        %v472 = vsel %vm470, %v459, %v465
        %v473 = vsel %vm470, %v461, %v467
        %v474 = vsel %vm470, %v463, %v457
        %v475 = vsel %vm470, %v465, %v459
        %v476 = vsel %vm470, %v467, %v461
        %v477 = vperm.slane %v433, 0
        %v478 = vperm.slane %v434, 0
        %v479 = vmul.f32 %v474, %v477
        %v480 = vmul.f32 %v471, %v478
        %v481 = vmul.f32 %v475, %v477
        %v482 = vmul.f32 %v472, %v478
        %v483 = vmul.f32 %v476, %v477
        %v484 = vmul.f32 %v473, %v478
        %485 = vset.pattern.permute.xlu0 0
        %486 = vperm.xlu0 %485, %v430
        %v487 = vpop.permute.xlu0 %486
        %489 = vset.pattern.permute.xlu0 0
        %490 = vperm.xlu0 %489, %v431
        %v491 = vpop.permute.xlu0 %490
        %493 = vset.pattern.permute.xlu0 0
        %494 = vperm.xlu0 %493, %v432
        %v495 = vpop.permute.xlu0 %494
        %v497 = vmul.f32 %v479, %v487
        %v498 = vmul.f32 %v480, %v487
        %v499 = vmul.f32 %v481, %v491
        %v500 = vmul.f32 %v482, %v491
        %v501 = vmul.f32 %v483, %v495
        %v502 = vmul.f32 %v484, %v495
        %v503 = vadd.f32 %v450, %v497
        %v504 = vadd.f32 %v451, %v498
        %v505 = vadd.f32 %v452, %v499
        %v506 = vadd.f32 %v453, %v500
        %v507 = vadd.f32 %v454, %v501
        %v508 = vadd.f32 %v455, %v502
        %509 = vrot.lane.b32.xlu0 %v424, 16
        %v510 = vpop.permute.xlu0 %509
        %511 = vrot.lane.b32.xlu0 %v426, 16
        %v512 = vpop.permute.xlu0 %511
        %513 = vrot.lane.b32.xlu0 %v428, 16
        %v514 = vpop.permute.xlu0 %513
        %515 = vrot.lane.b32.xlu0 %v425, 16
        %v516 = vpop.permute.xlu0 %515
        %517 = vrot.lane.b32.xlu0 %v427, 16
        %v518 = vpop.permute.xlu0 %517
        %519 = vrot.lane.b32.xlu0 %v429, 16
        %v520 = vpop.permute.xlu0 %519
        %vm521 = vcmp.lt.s32.totalorder %v469, 16
        %v522 = vsel %vm521, %v510, %v516
        %v523 = vsel %vm521, %v512, %v518
        %v524 = vsel %vm521, %v514, %v520
        %v525 = vsel %vm521, %v516, %v510
        %v526 = vsel %vm521, %v518, %v512
        %v527 = vsel %vm521, %v520, %v514
        %v528 = vperm.slane %v433, 1
        %v529 = vperm.slane %v434, 1
        %v530 = vmul.f32 %v525, %v528
        %v531 = vmul.f32 %v522, %v529
        %v532 = vmul.f32 %v526, %v528
        %v533 = vmul.f32 %v523, %v529
        %v534 = vmul.f32 %v527, %v528
        %v535 = vmul.f32 %v524, %v529
        %536 = vset.pattern.permute.xlu0 1
        %537 = vperm.xlu0 %536, %v430
        %v538 = vpop.permute.xlu0 %537
        %540 = vset.pattern.permute.xlu0 1
        %541 = vperm.xlu0 %540, %v431
        %v542 = vpop.permute.xlu0 %541
        %544 = vset.pattern.permute.xlu0 1
        %545 = vperm.xlu0 %544, %v432
        %v546 = vpop.permute.xlu0 %545
        %v548 = vmul.f32 %v530, %v538
        %v549 = vmul.f32 %v531, %v538
        %v550 = vmul.f32 %v532, %v542
        %v551 = vmul.f32 %v533, %v542
        %v552 = vmul.f32 %v534, %v546
        %v553 = vmul.f32 %v535, %v546
        %v554 = vadd.f32 %v503, %v548
        %v555 = vadd.f32 %v504, %v549
        %v556 = vadd.f32 %v505, %v550
        %v557 = vadd.f32 %v506, %v551
        %v558 = vadd.f32 %v507, %v552
        %v559 = vadd.f32 %v508, %v553
        %560 = vrot.lane.b32.xlu0 %v424, 15
        %v561 = vpop.permute.xlu0 %560
        %562 = vrot.lane.b32.xlu0 %v426, 15
        %v563 = vpop.permute.xlu0 %562
        %564 = vrot.lane.b32.xlu0 %v428, 15
        %v565 = vpop.permute.xlu0 %564
        %566 = vrot.lane.b32.xlu0 %v425, 15
        %v567 = vpop.permute.xlu0 %566
        %568 = vrot.lane.b32.xlu0 %v427, 15
        %v569 = vpop.permute.xlu0 %568
        %570 = vrot.lane.b32.xlu0 %v429, 15
        %v571 = vpop.permute.xlu0 %570
        %vm572 = vcmp.lt.s32.totalorder %v469, 15
        %v573 = vsel %vm572, %v561, %v567
        %v574 = vsel %vm572, %v563, %v569
        %v575 = vsel %vm572, %v565, %v571
        %v576 = vsel %vm572, %v567, %v561
        %v577 = vsel %vm572, %v569, %v563
        %v578 = vsel %vm572, %v571, %v565
        %v579 = vperm.slane %v433, 2
        %v580 = vperm.slane %v434, 2
        %v581 = vmul.f32 %v576, %v579
        %v582 = vmul.f32 %v573, %v580
        %v583 = vmul.f32 %v577, %v579
        %v584 = vmul.f32 %v574, %v580
        %v585 = vmul.f32 %v578, %v579
        %v586 = vmul.f32 %v575, %v580
        %587 = vset.pattern.permute.xlu0 2
        %588 = vperm.xlu0 %587, %v430
        %v589 = vpop.permute.xlu0 %588
        %591 = vset.pattern.permute.xlu0 2
        %592 = vperm.xlu0 %591, %v431
        %v593 = vpop.permute.xlu0 %592
        %595 = vset.pattern.permute.xlu0 2
        %596 = vperm.xlu0 %595, %v432
        %v597 = vpop.permute.xlu0 %596
        %v599 = vmul.f32 %v581, %v589
        %v600 = vmul.f32 %v582, %v589
        %v601 = vmul.f32 %v583, %v593
        %v602 = vmul.f32 %v584, %v593
        %v603 = vmul.f32 %v585, %v597
        %v604 = vmul.f32 %v586, %v597
        %v605 = vadd.f32 %v554, %v599
        %v606 = vadd.f32 %v555, %v600
        %v607 = vadd.f32 %v556, %v601
        %v608 = vadd.f32 %v557, %v602
        %v609 = vadd.f32 %v558, %v603
        %v610 = vadd.f32 %v559, %v604
        %611 = vrot.lane.b32.xlu0 %v424, 1
        %v612 = vpop.permute.xlu0 %611
        %613 = vrot.lane.b32.xlu0 %v426, 1
        %v614 = vpop.permute.xlu0 %613
        %615 = vrot.lane.b32.xlu0 %v428, 1
        %v616 = vpop.permute.xlu0 %615
        %617 = vrot.lane.b32.xlu0 %v425, 1
        %v618 = vpop.permute.xlu0 %617
        %619 = vrot.lane.b32.xlu0 %v427, 1
        %v620 = vpop.permute.xlu0 %619
        %621 = vrot.lane.b32.xlu0 %v429, 1
        %v622 = vpop.permute.xlu0 %621
        %vm623 = vcmp.lt.s32.totalorder %v469, 1
        %v624 = vsel %vm623, %v612, %v618
        %v625 = vsel %vm623, %v614, %v620
        %v626 = vsel %vm623, %v616, %v622
        %v627 = vsel %vm623, %v618, %v612
        %v628 = vsel %vm623, %v620, %v614
        %v629 = vsel %vm623, %v622, %v616
        %v630 = vperm.slane %v433, 3
        %v631 = vperm.slane %v434, 3
        %v632 = vmul.f32 %v627, %v630
        %v633 = vmul.f32 %v624, %v631
        %v634 = vmul.f32 %v628, %v630
        %v635 = vmul.f32 %v625, %v631
        %v636 = vmul.f32 %v629, %v630
        %v637 = vmul.f32 %v626, %v631
        %638 = vset.pattern.permute.xlu0 3
        %639 = vperm.xlu0 %638, %v430
        %v640 = vpop.permute.xlu0 %639
        %642 = vset.pattern.permute.xlu0 3
        %643 = vperm.xlu0 %642, %v431
        %v644 = vpop.permute.xlu0 %643
        %646 = vset.pattern.permute.xlu0 3
        %647 = vperm.xlu0 %646, %v432
        %v648 = vpop.permute.xlu0 %647
        %v650 = vmul.f32 %v632, %v640
        %v651 = vmul.f32 %v633, %v640
        %v652 = vmul.f32 %v634, %v644
        %v653 = vmul.f32 %v635, %v644
        %v654 = vmul.f32 %v636, %v648
        %v655 = vmul.f32 %v637, %v648
        %v656 = vadd.f32 %v605, %v650
        %v657 = vadd.f32 %v606, %v651
        %v658 = vadd.f32 %v607, %v652
        %v659 = vadd.f32 %v608, %v653
        %v660 = vadd.f32 %v609, %v654
        %v661 = vadd.f32 %v610, %v655
        %662 = vrot.lane.b32.xlu0 %v424, 127
        %v663 = vpop.permute.xlu0 %662
        %664 = vrot.lane.b32.xlu0 %v426, 127
        %v665 = vpop.permute.xlu0 %664
        %666 = vrot.lane.b32.xlu0 %v428, 127
        %v667 = vpop.permute.xlu0 %666
        %668 = vrot.lane.b32.xlu0 %v425, 127
        %v669 = vpop.permute.xlu0 %668
        %670 = vrot.lane.b32.xlu0 %v427, 127
        %v671 = vpop.permute.xlu0 %670
        %672 = vrot.lane.b32.xlu0 %v429, 127
        %v673 = vpop.permute.xlu0 %672
        %vm674 = vcmp.lt.s32.totalorder %v469, 127
        %v675 = vsel %vm674, %v663, %v669
        %v676 = vsel %vm674, %v665, %v671
        %v677 = vsel %vm674, %v667, %v673
        %v678 = vsel %vm674, %v669, %v663
        %v679 = vsel %vm674, %v671, %v665
        %v680 = vsel %vm674, %v673, %v667
        %v681 = vperm.slane %v433, 4
        %v682 = vperm.slane %v434, 4
        %v683 = vmul.f32 %v675, %v681
        %v684 = vmul.f32 %v678, %v682
        %v685 = vmul.f32 %v676, %v681
        %v686 = vmul.f32 %v679, %v682
        %v687 = vmul.f32 %v677, %v681
        %v688 = vmul.f32 %v680, %v682
        %689 = vset.pattern.permute.xlu0 5
        %690 = vperm.xlu0 %689, %v430
        %v691 = vpop.permute.xlu0 %690
        %693 = vset.pattern.permute.xlu0 5
        %694 = vperm.xlu0 %693, %v431
        %v695 = vpop.permute.xlu0 %694
        %697 = vset.pattern.permute.xlu0 5
        %698 = vperm.xlu0 %697, %v432
        %v699 = vpop.permute.xlu0 %698
        %v701 = vmul.f32 %v683, %v691
        %v702 = vmul.f32 %v684, %v691
        %v703 = vmul.f32 %v685, %v695
        %v704 = vmul.f32 %v686, %v695
        %v705 = vmul.f32 %v687, %v699
        %v706 = vmul.f32 %v688, %v699
        %v707 = vadd.f32 %v656, %v701
        %v708 = vadd.f32 %v657, %v702
        %v709 = vadd.f32 %v658, %v703
        %v710 = vadd.f32 %v659, %v704
        %v711 = vadd.f32 %v660, %v705
        %v712 = vadd.f32 %v661, %v706
        %713 = vrot.lane.b32.xlu0 %v424, 113
        %v714 = vpop.permute.xlu0 %713
        %715 = vrot.lane.b32.xlu0 %v426, 113
        %v716 = vpop.permute.xlu0 %715
        %717 = vrot.lane.b32.xlu0 %v428, 113
        %v718 = vpop.permute.xlu0 %717
        %719 = vrot.lane.b32.xlu0 %v425, 113
        %v720 = vpop.permute.xlu0 %719
        %721 = vrot.lane.b32.xlu0 %v427, 113
        %v722 = vpop.permute.xlu0 %721
        %723 = vrot.lane.b32.xlu0 %v429, 113
        %v724 = vpop.permute.xlu0 %723
        %vm725 = vcmp.lt.s32.totalorder %v469, 113
        %v726 = vsel %vm725, %v714, %v720
        %v727 = vsel %vm725, %v716, %v722
        %v728 = vsel %vm725, %v718, %v724
        %v729 = vsel %vm725, %v720, %v714
        %v730 = vsel %vm725, %v722, %v716
        %v731 = vsel %vm725, %v724, %v718
        %v732 = vperm.slane %v433, 5
        %v733 = vperm.slane %v434, 5
        %v734 = vmul.f32 %v726, %v732
        %v735 = vmul.f32 %v729, %v733
        %v736 = vmul.f32 %v727, %v732
        %v737 = vmul.f32 %v730, %v733
        %v738 = vmul.f32 %v728, %v732
        %v739 = vmul.f32 %v731, %v733
        %740 = vset.pattern.permute.xlu0 6
        %741 = vperm.xlu0 %740, %v430
        %v742 = vpop.permute.xlu0 %741
        %744 = vset.pattern.permute.xlu0 6
        %745 = vperm.xlu0 %744, %v431
        %v746 = vpop.permute.xlu0 %745
        %748 = vset.pattern.permute.xlu0 6
        %749 = vperm.xlu0 %748, %v432
        %v750 = vpop.permute.xlu0 %749
        %v752 = vmul.f32 %v734, %v742
        %v753 = vmul.f32 %v735, %v742
        %v754 = vmul.f32 %v736, %v746
        %v755 = vmul.f32 %v737, %v746
        %v756 = vmul.f32 %v738, %v750
        %v757 = vmul.f32 %v739, %v750
        %v758 = vadd.f32 %v707, %v752
        %v759 = vadd.f32 %v708, %v753
        %v760 = vadd.f32 %v709, %v754
        %v761 = vadd.f32 %v710, %v755
        %v762 = vadd.f32 %v711, %v756
        %v763 = vadd.f32 %v712, %v757
        %764 = vrot.lane.b32.xlu0 %v424, 112
        %v765 = vpop.permute.xlu0 %764
        %766 = vrot.lane.b32.xlu0 %v426, 112
        %v767 = vpop.permute.xlu0 %766
        %768 = vrot.lane.b32.xlu0 %v428, 112
        %v769 = vpop.permute.xlu0 %768
        %770 = vrot.lane.b32.xlu0 %v425, 112
        %v771 = vpop.permute.xlu0 %770
        %772 = vrot.lane.b32.xlu0 %v427, 112
        %v773 = vpop.permute.xlu0 %772
        %774 = vrot.lane.b32.xlu0 %v429, 112
        %v775 = vpop.permute.xlu0 %774
        %vm776 = vcmp.lt.s32.totalorder %v469, 112
        %v777 = vsel %vm776, %v765, %v771
        %v778 = vsel %vm776, %v767, %v773
        %v779 = vsel %vm776, %v769, %v775
        %v780 = vsel %vm776, %v771, %v765
        %v781 = vsel %vm776, %v773, %v767
        %v782 = vsel %vm776, %v775, %v769
        %v783 = vperm.slane %v433, 6
        %v784 = vperm.slane %v434, 6
        %v785 = vmul.f32 %v777, %v783
        %v786 = vmul.f32 %v780, %v784
        %v787 = vmul.f32 %v778, %v783
        %v788 = vmul.f32 %v781, %v784
        %v789 = vmul.f32 %v779, %v783
        %v790 = vmul.f32 %v782, %v784
        %791 = vset.pattern.permute.xlu0 7
        %792 = vperm.xlu0 %791, %v430
        %v793 = vpop.permute.xlu0 %792
        %795 = vset.pattern.permute.xlu0 7
        %796 = vperm.xlu0 %795, %v431
        %v797 = vpop.permute.xlu0 %796
        %799 = vset.pattern.permute.xlu0 7
        %800 = vperm.xlu0 %799, %v432
        %v801 = vpop.permute.xlu0 %800
        %v803 = vmul.f32 %v785, %v793
        %v804 = vmul.f32 %v786, %v793
        %v805 = vmul.f32 %v787, %v797
        %v806 = vmul.f32 %v788, %v797
        %v807 = vmul.f32 %v789, %v801
        %v808 = vmul.f32 %v790, %v801
        %v809 = vadd.f32 %v758, %v803
        %v810 = vadd.f32 %v759, %v804
        %v811 = vadd.f32 %v760, %v805
        %v812 = vadd.f32 %v761, %v806
        %v813 = vadd.f32 %v762, %v807
        %v814 = vadd.f32 %v763, %v808
        %815 = vrot.lane.b32.xlu0 %v424, 111
        %v816 = vpop.permute.xlu0 %815
        %817 = vrot.lane.b32.xlu0 %v426, 111
        %v818 = vpop.permute.xlu0 %817
        %819 = vrot.lane.b32.xlu0 %v428, 111
        %v820 = vpop.permute.xlu0 %819
        %821 = vrot.lane.b32.xlu0 %v425, 111
        %v822 = vpop.permute.xlu0 %821
        %823 = vrot.lane.b32.xlu0 %v427, 111
        %v824 = vpop.permute.xlu0 %823
        %825 = vrot.lane.b32.xlu0 %v429, 111
        %v826 = vpop.permute.xlu0 %825
        %vm827 = vcmp.lt.s32.totalorder %v469, 111
        %v828 = vsel %vm827, %v816, %v822
        %v829 = vsel %vm827, %v818, %v824
        %v830 = vsel %vm827, %v820, %v826
        %v831 = vsel %vm827, %v822, %v816
        %v832 = vsel %vm827, %v824, %v818
        %v833 = vsel %vm827, %v826, %v820
        %v834 = vperm.slane %v433, 7
        %v835 = vperm.slane %v434, 7
        %v836 = vmul.f32 %v828, %v834
        %v837 = vmul.f32 %v831, %v835
        %v838 = vmul.f32 %v829, %v834
        %v839 = vmul.f32 %v832, %v835
        %v840 = vmul.f32 %v830, %v834
        %v841 = vmul.f32 %v833, %v835
        %842 = vset.pattern.permute.xlu0 8
        %843 = vperm.xlu0 %842, %v430
        %v844 = vpop.permute.xlu0 %843
        %846 = vset.pattern.permute.xlu0 8
        %847 = vperm.xlu0 %846, %v431
        %v848 = vpop.permute.xlu0 %847
        %850 = vset.pattern.permute.xlu0 8
        %851 = vperm.xlu0 %850, %v432
        %v852 = vpop.permute.xlu0 %851
        %v854 = vmul.f32 %v836, %v844
        %v855 = vmul.f32 %v837, %v844
        %v856 = vmul.f32 %v838, %v848
        %v857 = vmul.f32 %v839, %v848
        %v858 = vmul.f32 %v840, %v852
        %v859 = vmul.f32 %v841, %v852
        %v860 = vadd.f32 %v809, %v854
        %v861 = vadd.f32 %v810, %v855
        %v862 = vadd.f32 %v811, %v856
        %v863 = vadd.f32 %v812, %v857
        %v864 = vadd.f32 %v813, %v858
        %v865 = vadd.f32 %v814, %v859
        %v866 = vld [vmem:[%s4] sm:$0xff]
        %v867 = vld [vmem:[%s4 + $0x8] sm:$0xff]
        %v868 = vld [vmem:[%s4 + $0x10] sm:$0xff]
        %870 = vset.pattern.permute.xlu0 0
        %871 = vperm.xlu0 %870, %v866
        %v872 = vpop.permute.xlu0 %871
        %875 = vset.pattern.permute.xlu0 0
        %876 = vperm.xlu0 %875, %v867
        %v877 = vpop.permute.xlu0 %876
        %880 = vset.pattern.permute.xlu0 0
        %881 = vperm.xlu0 %880, %v868
        %v882 = vpop.permute.xlu0 %881
        %v884 = vadd.f32 %v860, %v872
        %v885 = vadd.f32 %v861, %v872
        %v886 = vadd.f32 %v862, %v877
        %v887 = vadd.f32 %v863, %v877
        %v888 = vadd.f32 %v864, %v882
        %v889 = vadd.f32 %v865, %v882
        %v890 = vmax.f32 %v884, 0.0
        %v891 = vmax.f32 %v885, 0.0
        %v892 = vmax.f32 %v886, 0.0
        %v893 = vmax.f32 %v887, 0.0
        %v894 = vmax.f32 %v888, 0.0
        %v895 = vmax.f32 %v889, 0.0
        %v896 = vld [vmem:[%s5] sm:$0xff]
        %v897 = vld [vmem:[%s6] sm:$0xff]
        %899 = vset.pattern.permute.xlu0 0
        %900 = vperm.xlu0 %899, %v897
        %v901 = vpop.permute.xlu0 %900
        %vm903 = vcmask 195584
        %v905 = vsel %vm903, %v896, 0
        %907 = vmatpush.msra.mxu0 0.0
        %908 = vmatpush.msra.mxu0 0.0
        %909 = vmatpush.msra.mxu0 0.0
        %910 = vmatpush.msra.mxu0 0.0
        %911 = vmatpush.msra.mxu0 0.0
        %912 = vmatpush.msra.mxu0 0.0
        %913 = vmatpush.msra.mxu0 0.0
        %914 = vmatpush.msra.mxu0 0.0
        %915 = vmatpush.msra.mxu0 0.0
        %916 = vmatpush.msra.mxu0 0.0
        %917 = vmatpush.msra.mxu0 0.0
        %918 = vmatpush.msra.mxu0 0.0
        %919 = vmatpush.msra.mxu0 0.0
        %920 = vmatpush.msra.mxu0 %v894
        %921 = vmatpush.msra.mxu0 %v892
        %922 = vmatpush.msra.mxu0 %v890
        %923 = vmatmul.f32.gmra.mxu0 %v905
        %v924 = vpop.f32.mrf.mxu0
        %v925 = vadd.f32 %v901, %v924
        %926 = vdwg.mxu0
        %927 = vmatpush.msra.mxu0 0.0
        %928 = vmatpush.msra.mxu0 0.0
        %929 = vmatpush.msra.mxu0 0.0
        %930 = vmatpush.msra.mxu0 0.0
        %931 = vmatpush.msra.mxu0 0.0
        %932 = vmatpush.msra.mxu0 0.0
        %933 = vmatpush.msra.mxu0 0.0
        %934 = vmatpush.msra.mxu0 0.0
        %935 = vmatpush.msra.mxu0 0.0
        %936 = vmatpush.msra.mxu0 0.0
        %937 = vmatpush.msra.mxu0 0.0
        %938 = vmatpush.msra.mxu0 0.0
        %939 = vmatpush.msra.mxu0 0.0
        %940 = vmatpush.msra.mxu0 %v895
        %941 = vmatpush.msra.mxu0 %v893
        %942 = vmatpush.msra.mxu0 %v891
        %943 = vmatmul.f32.gmra.mxu0 %v905
        %v944 = vpop.f32.mrf.mxu0
        %v945 = vadd.f32 %v901, %v944
        %946 = vdwg.mxu0
        %v947 = vld [vmem:[%s8] sm:$0xff]
        %948 = vst [vmem:[#allocation1] ss:$2 sm:$0xff] %v334
        %v949 = vld.sshfl [vmem:[#allocation1] sm:$0xff pattern:$0x75316420]
        %v950 = vld.sshfl [vmem:[#allocation1 + $0x8] sm:$0xff pattern:$0x75316420]
        %v952 = vsel %vm357, %v947, 0
        %v954 = vsel %vm367, %v949, 0
        %v956 = vsel %vm367, %v950, 0
        %958 = vmatpush.msra.mxu0 0.0
        %959 = vmatpush.msra.mxu0 0.0
        %960 = vmatpush.msra.mxu0 0.0
        %961 = vmatpush.msra.mxu0 0.0
        %962 = vmatpush.msra.mxu0 0.0
        %963 = vmatpush.msra.mxu0 0.0
        %964 = vmatpush.msra.mxu0 0.0
        %965 = vmatpush.msra.mxu0 0.0
        %966 = vmatpush.msra.mxu0 0.0
        %967 = vmatpush.msra.mxu0 0.0
        %968 = vmatpush.msra.mxu0 0.0
        %969 = vmatpush.msra.mxu0 0.0
        %970 = vmatpush.msra.mxu0 0.0
        %971 = vmatpush.msra.mxu0 0.0
        %972 = vmatpush.msra.mxu0 0.0
        %973 = vmatpush.msra.mxu0 %v954
        %974 = vmatmul.f32.gmra.mxu0 %v952
        %v975 = vpop.f32.mrf.mxu0
        %v976 = vadd.f32 0.0, %v975
        %977 = vdwg.mxu0
        %978 = vmatpush.msra.mxu0 0.0
        %979 = vmatpush.msra.mxu0 0.0
        %980 = vmatpush.msra.mxu0 0.0
        %981 = vmatpush.msra.mxu0 0.0
        %982 = vmatpush.msra.mxu0 0.0
        %983 = vmatpush.msra.mxu0 0.0
        %984 = vmatpush.msra.mxu0 0.0
        %985 = vmatpush.msra.mxu0 0.0
        %986 = vmatpush.msra.mxu0 0.0
        %987 = vmatpush.msra.mxu0 0.0
        %988 = vmatpush.msra.mxu0 0.0
        %989 = vmatpush.msra.mxu0 0.0
        %990 = vmatpush.msra.mxu0 0.0
        %991 = vmatpush.msra.mxu0 0.0
        %992 = vmatpush.msra.mxu0 0.0
        %993 = vmatpush.msra.mxu0 %v956
        %994 = vmatmul.f32.gmra.mxu0 %v952
        %v995 = vpop.f32.mrf.mxu0
        %v996 = vadd.f32 0.0, %v995
        %997 = vdwg.mxu0
        %v998 = vadd.f32 %v925, %v976
        %v999 = vadd.f32 %v945, %v996
        %1000 = vst [vmem:[%s325] sm:$0xff] %v998
        %1001 = vst [vmem:[%s325 + $0x8] sm:$0xff] %v999
        %s1002 = sand.u32 %s225, 1
        %s1003 = scalar_lea.sflag [#allocation3], %s1002
        %s1004 = sand.u32 %s225, 1
        %s1005 = smul.addr %s1004, 16
        %s1006 = scalar_lea.vmem [#allocation2], %s1005
        // Predicated region
        $region57: #{tpu_custom_call.1} parent=55 // pred_check
          %p1007 = pneg %p235
        $region58: #{tpu_custom_call.1} parent=55 // pred_check_branch
          %1009 = sbr.rel (%p1007) target = $region60
        $region59: #{tpu_custom_call.1} parent=55 // pred_region
          %1011 = vsyncadd %s1003, 0
          %s1012 = smul.addr %s23, 2
          %s1013 = smul.addr %s1012, 8
          %s1014 = scalar_lea.hbm %s9, %s1013
          %s1016 = sshll.u32 %s1006, 4
          %s1017 = int_to_ptr.vmem [resolvable:$true] %s1016
          %s1018 = sshll.u32 %s1014, 4
          %s1019 = int_to_ptr.hbm [resolvable:$true] %s1018
          %1021 = dma.vmem_to_hbm [thread:$0]  %s1017, 256, %s1019, %s1003
        $region60: #{tpu_custom_call.1} parent=55 // pred_fallthru
          _
      $region56: #{tpu_custom_call.1} parent=5 // pred_fallthru
        _
      %p1022 = scmp.le.s32.totalorder 2, %s18
      // Predicated region
      $region61: #{tpu_custom_call.1} parent=5 // pred_check
        %p1023 = pneg %p1022
      $region62: #{tpu_custom_call.1} parent=5 // pred_check_branch
        %1025 = sbr.rel (%p1023) target = $region64
      $region63: #{tpu_custom_call.1} parent=5 // pred_region
        %s1026 = ssub.s32 %s18, 2
        // Predicated region
        $region65: #{tpu_custom_call.1} parent=63 // pred_check
          %p1027 = pneg %p241
        $region66: #{tpu_custom_call.1} parent=63 // pred_check_branch
          %1029 = sbr.rel (%p1027) target = $region68
        $region67: #{tpu_custom_call.1} parent=63 // pred_region
          %s1030 = sand.u32 %s226, 1
          %s1031 = scalar_lea.sflag [#allocation3], %s1030
          %s1032 = sand.u32 %s226, 1
          %s1033 = smul.addr %s1032, 16
          %s1034 = scalar_lea.vmem [#allocation2], %s1033
          %1036 = dma.done %s1031, 256
        $region68: #{tpu_custom_call.1} parent=63 // pred_fallthru
          _
      $region64: #{tpu_custom_call.1} parent=5 // pred_fallthru
        _
    $region6: #{tpu_custom_call.1} parent=1 // loop_footer
      %s22 = sadd.s32 1, %s18
    $region7: #{tpu_custom_call.1} parent=1 // loop_footer_branch
      %17 = sbr.rel target = $region3
    $region8: #{tpu_custom_call.1} parent=1 // loop_exit
      _
    %1037 = vsyncpa [#allocation3], 1
    %s1038 = scalar_lea.sflag [#allocation3], 1
    %1039 = vsyncpa %s1038, 1

</llo_original>
